<compile_context>
chip_gen: v5e
topology: v5e:2x2
jax: 0.10.0
libtpu: 0.0.40
codegen_flags: <defaults>
</compile_context>

<pallas_src>
import jax
import jax.numpy as jnp
from jax.experimental import pallas as pl
from jax.experimental.pallas import tpu as pltpu


def _dma_identity_copy_kernel(x_hbm_ref, o_hbm_ref, sem):
    # Single whole-array HBM->HBM DMA descriptor; no VMEM staging.
    copy = pltpu.make_async_copy(x_hbm_ref, o_hbm_ref, sem)
    copy.start()
    copy.wait()


def _pallas_identity_copy(x):
    """Materialized identity copy via a direct HBM->HBM DMA Pallas kernel."""
    if x.ndim == 0 or x.size == 0:
        # No DMA possible for 0-d / empty arrays; still return an independent
        # buffer (never alias the input on the materialized path).
        return jnp.copy(x)

    return pl.pallas_call(
        _dma_identity_copy_kernel,
        out_shape=jax.ShapeDtypeStruct(x.shape, x.dtype),
        in_specs=[pl.BlockSpec(memory_space=pl.ANY)],
        out_specs=pl.BlockSpec(memory_space=pl.ANY),
        scratch_shapes=[pltpu.SemaphoreType.DMA],
    )(x)


def empty_temporal_module_3d(hidden_states,
                             condition_video=None,
                             encoder_hidden_states=None,
                             timesteps=None,
                             temb=None,
                             attention_mask=None,
                             materialize_copy=False):
    """Identity forward matching EmptyTemporalModule3D.forward.

    All auxiliary arguments are accepted and ignored, exactly like the
    PyTorch module.  By default this is a true pass-through (no HBM traffic);
    set `materialize_copy=True` to route the data through the Pallas
    HBM->HBM DMA copy kernel and obtain an independent output buffer.
    """
    if not materialize_copy:
        # Highest-value optimization: the module is a pure identity — do no work.
        return hidden_states
    return _pallas_identity_copy(hidden_states)


if __name__ == "__main__":
    key = jax.random.PRNGKey(0)
    # NCTHW: batch=2, channels=4, frames=8, height=16, width=16
    B, C, T, H, W = 2, 4, 8, 16, 16
    hidden_states = jax.random.normal(key, (B, C, T, H, W), dtype=jnp.float32)

    # Default fast path: pure pass-through (no kernel launch, no copy).
    out_fast = empty_temporal_module_3d(hidden_states)
    assert out_fast is hidden_states

    # Materialized path: exercises the Pallas HBM->HBM DMA identity kernel.
    out = empty_temporal_module_3d(hidden_states,
                                   condition_video=None,
                                   encoder_hidden_states=None,
                                   timesteps=None,
                                   temb=None,
                                   attention_mask=None,
                                   materialize_copy=True)
    out = jax.block_until_ready(out)
    assert out.shape == hidden_states.shape
    assert out.dtype == hidden_states.dtype
    assert bool(jnp.array_equal(out, hidden_states))

    # Non-128-divisible element count (previously silently aliased): the DMA
    # path handles any shape and returns an independent buffer.
    odd = jax.random.normal(jax.random.PRNGKey(1), (3, 5, 7), dtype=jnp.float32)
    odd_out = jax.block_until_ready(
        empty_temporal_module_3d(odd, materialize_copy=True))
    assert odd_out.shape == odd.shape
    assert bool(jnp.array_equal(odd_out, odd))

    print("KERNEL_OK")
</pallas_src>

<mosaic_0001>
module attributes {stable_mosaic.version = 11 : i64} {
  func.func @_dma_identity_copy_kernel(%arg0: memref<2x4x8x16x16xf32, #tpu.memory_space<any>>, %arg1: memref<2x4x8x16x16xf32, #tpu.memory_space<any>>, %arg2: memref<!tpu.dma_semaphore, #tpu.memory_space<semaphore_mem>>) attributes {dimension_semantics = [], scalar_prefetch = 0 : i64, scratch_operands = 1 : i64, tpu.core_type = #tpu.core_type<tc>} {
    tpu.enqueue_dma source(%arg0 : memref<2x4x8x16x16xf32, #tpu.memory_space<any>>) target(%arg1 : memref<2x4x8x16x16xf32, #tpu.memory_space<any>>) target_semaphore(%arg2 : memref<!tpu.dma_semaphore, #tpu.memory_space<semaphore_mem>>)
    tpu.wait_dma2 semaphore(%arg2 : memref<!tpu.dma_semaphore, #tpu.memory_space<semaphore_mem>>) src(%arg0 : memref<2x4x8x16x16xf32, #tpu.memory_space<any>>) dst(%arg1 : memref<2x4x8x16x16xf32, #tpu.memory_space<any>>)
    return
  }
}

</mosaic_0001>

<llo_original>
// kernel: tpu_custom_call.1
$region0: #{tpu_custom_call.1}
  #allocation0 [shape = 'u32[]', space=smem, size = 0x4, offset = 0x4, fixed_abs, tag = 'smem constant byte address 0x4 - core index']
  #allocation1 [shape = 'u32[72,128]{1,0:T(1,128)}', space=vmem, size = 0x9000, scoped, tag = 'internal scratch']
  #allocation2 [shape = 's32[1]{0}', space=sflag, size = 0x4, scoped, tag = 'scratch operand']
  #allocation3 [shape = 's32[]', space=sflag, size = 0x4, offset = 0, fixed_abs, tag = 'sflag constant byte address 0x0 - dummy sync flag']
  #allocation4 [shape = 'u32[0]{0}', space=smem, size = 0, offset = 0, fixed_abs, tag = 'smem constant byte address 0x0 - null']
  %s0 = inlined_call_operand.hbm [shape: f32[2,4,8,16,16], index: 0, kind: input, shape index: {}]
  %s1 = inlined_call_operand.hbm [shape: f32[2,4,8,16,16], index: 1, kind: output, shape index: {}]
  %s2 = sld [smem:[#allocation0]]
  $region2: #{tpu_custom_call.1} parent=0
    _
  %s4 = ssub.s32 1, %s2
  %s5 = scalar_select 0, %s4, %s2
  %s7 = sshll.u32 1, 14
  %s8 = sxor.u32 4294967295, %s7
  %s10 = sshll.u32 %s0, 4
  %s11 = int_to_ptr.hbm [resolvable:$true] %s10
  %s12 = sshll.u32 %s1, 4
  %s13 = int_to_ptr.hbm [resolvable:$true] %s12
  %16 = dma.general %s11, 16384, %s13, [#allocation2], [#allocation3], [#allocation4], 0, 0
  %s17 = smul.u32 2, 4
  %s18 = smul.u32 %s17, 8
  %s19 = smul.u32 %s18, 16
  %s20 = smul.u32 %s19, 1
  %s21 = sshll.u32 %s20, 4
  %22 = dma.done [#allocation2], %s21
  %23 = vsyncmov [#allocation2]
  %s24 = vpop.sfrf %23
  %p25 = scmp.eq.s32.totalorder %s24, 0
  %p26 = pneg %p25
  %28 = shalt.err (%p26)

</llo_original>
